<compile_context>
chip_gen: v5e
topology: v5e:2x2
jax: 0.10.0
libtpu: 0.0.40
codegen_flags: <defaults>
</compile_context>

<pallas_src>
import numpy as np
import jax
import jax.numpy as jnp
from jax import lax
from jax.experimental import pallas as pl
from jax.experimental.pallas import tpu as pltpu


def block_kernel(xcat_ref, id_ref, w1_ref, w2_ref, bias_ref, o_ref):
    # xcat_ref : (Rh, 3*L) f32  row-shifted, lane-concatenated zero-padded input (L = N*W*C)
    # id_ref   : (H, L)    f32  identity branch (packed input)
    # w1_ref   : (3*L, L)  f32  fused banded conv1 weight (BN1 scale folded in)
    # w2_ref   : (3, L, L) f32  banded conv2 weight, one matrix per row tap (BN2 scale folded in)
    # bias_ref : (2, L)    f32  row 0 = BN1 bias, row 1 = BN2 bias (tiled over n, w)
    # o_ref    : (H, L)    f32
    H = o_ref.shape[0]
    Rh = xcat_ref.shape[0]

    b1 = bias_ref[0:1, :]
    b2 = bias_ref[1:2, :]

    # ---- conv1 (+ folded BN1 scale): a single MXU matmul with K = 3*L ----
    h = jnp.dot(xcat_ref[...], w1_ref[...], preferred_element_type=jnp.float32)

    # ---- BN1 bias + ReLU; zero rows outside the image (== reference's zero-padded intermediate)
    r = lax.broadcasted_iota(jnp.int32, (Rh, 1), 0)
    hb = jnp.where((r >= 1) & (r <= H), jnp.maximum(h + b1, 0.0), 0.0)

    # ---- conv2 (+ folded BN2 scale): 3 row taps, shifts via XLU sublane roll + aligned slices
    hb1 = pltpu.roll(hb, Rh - 1, 0)   # hb1[i] = hb[i + 1]  (wrapped rows land past row H-1)
    hb2 = pltpu.roll(hb, Rh - 2, 0)   # hb2[i] = hb[i + 2]
    o = jnp.dot(hb[0:H], w2_ref[0], preferred_element_type=jnp.float32)
    o = o + jnp.dot(hb1[0:H], w2_ref[1], preferred_element_type=jnp.float32)
    o = o + jnp.dot(hb2[0:H], w2_ref[2], preferred_element_type=jnp.float32)

    # ---- BN2 bias + residual + ReLU; unmasked 128-lane store ----
    o_ref[...] = jnp.maximum(o + b2 + id_ref[...], 0.0)


def _banded_blockdiag_weight(w_hwio, out_scale, N, W):
    """HWIO (3,3,Cin,Cout) conv weight -> (3, N*W*Cin, N*W*Cout) block-diagonal banded matrices.

    For row tap dy:
      Wt[dy][n*W*Cin + wi*Cin + ci, m*W*Cout + wo*Cout + co]
        = [n == m] * [wi == wo + dx - 1] * w[dy, dx, ci, co] * out_scale[co]
    which encodes the x-direction stencil + its zero padding (band) and batch independence
    (block diagonal).  Pure jnp (jittable); built once, outside the per-call path.
    """
    KH, KW, Cin, Cout = w_hwio.shape
    wi = np.arange(W)[:, None, None]
    dx = np.arange(KW)[None, :, None]
    wo = np.arange(W)[None, None, :]
    sel = jnp.asarray((wi == wo + dx - 1).astype(np.float32))        # (W, KW, W), constant
    w = w_hwio.astype(jnp.float32) * out_scale.astype(jnp.float32)[None, None, None, :]
    band = jnp.einsum("adw,ydcf->yacwf", sel, w)                     # (KH, W, Cin, W, Cout)
    band = band.reshape(KH, W * Cin, W * Cout)
    eye = jnp.eye(N, dtype=jnp.float32)
    full = jnp.einsum("nm,yio->ynimo", eye, band)                    # (KH, N, W*Cin, N, W*Cout)
    return full.reshape(KH, N * W * Cin, N * W * Cout)


def prepare_block_params(w1_hwio, w2_hwio, s1, b1, s2, b2, N, W):
    """One-time parameter preparation; BN scales folded into the banded conv weights."""
    C = w1_hwio.shape[-1]
    L = N * W * C
    w1t = _banded_blockdiag_weight(w1_hwio, s1, N, W)                # (3, L, L)
    w1cat = w1t.reshape(3 * L, L)                                    # fused K = 3*L for conv1
    w2t = _banded_blockdiag_weight(w2_hwio, s2, N, W)                # (3, L, L)
    bias = jnp.stack([jnp.tile(b1.astype(jnp.float32), N * W),
                      jnp.tile(b2.astype(jnp.float32), N * W)])      # (2, L)
    return w1cat, w2t, bias


def block_forward(x_nhwc, w1cat, w2t, bias):
    """Basic block, stride=1, no downsample. x_nhwc: (N,H,W,C) f32 -> (N,H,W,C) f32."""
    N, H, W, C = x_nhwc.shape
    L = N * W * C

    # --- pack lanes = (n, w, c): rows are image rows, all 128 lanes dense ---
    xpk = jnp.transpose(x_nhwc, (1, 0, 2, 3)).reshape(H, L).astype(jnp.float32)

    # conv1 output ("intermediate") rows cover image rows -1..H; round up to a sublane multiple
    Rh = ((H + 2 + 7) // 8) * 8
    R1 = Rh + 2                                   # zero-padded input rows
    xp = jnp.pad(xpk, ((2, R1 - H - 2), (0, 0)))  # 2 zero rows on top, rest at the bottom

    # fuse conv1's three row taps into one K = 3*L operand (wrapper-side, cheap XLA work)
    xcat = jnp.concatenate([xp[0:Rh], xp[1:Rh + 1], xp[2:Rh + 2]], axis=1)   # (Rh, 3*L)

    out = pl.pallas_call(
        block_kernel,
        out_shape=jax.ShapeDtypeStruct((H, L), jnp.float32),
        grid=(1,),   # whole (tiny) problem in one step; every operand is a single 128-lane slab
        in_specs=[
            pl.BlockSpec((Rh, 3 * L), lambda i: (0, 0)),
            pl.BlockSpec((H, L), lambda i: (0, 0)),
            pl.BlockSpec((3 * L, L), lambda i: (0, 0)),
            pl.BlockSpec((3, L, L), lambda i: (0, 0, 0)),
            pl.BlockSpec((2, L), lambda i: (0, 0)),
        ],
        out_specs=pl.BlockSpec((H, L), lambda i: (0, 0)),
        compiler_params=pltpu.CompilerParams(dimension_semantics=("arbitrary",)),
    )(xcat, xpk, w1cat, w2t, bias)

    # --- unpack (H, N*W*C) -> (N, H, W, C): one small transpose, no concat/slice epilogue ---
    return jnp.transpose(out.reshape(H, N, W, C), (1, 0, 2, 3))


def ref_block(x_nchw, w1_oihw, w2_oihw, s1, b1, s2, b2):
    """Pure-JAX f32 reference (NCHW, like PyTorch)."""
    def conv(x, w):
        return lax.conv_general_dilated(
            x, w, window_strides=(1, 1), padding=((1, 1), (1, 1)),
            dimension_numbers=("NCHW", "OIHW", "NCHW"))

    def bn(y, s, b):
        return y * s.reshape(1, -1, 1, 1) + b.reshape(1, -1, 1, 1)

    identity = x_nchw
    out = jnp.maximum(bn(conv(x_nchw, w1_oihw), s1, b1), 0.0)
    out = bn(conv(out, w2_oihw), s2, b2)
    out = out + identity
    return jnp.maximum(out, 0.0)


if __name__ == "__main__":
    # Small shapes: batch=2, inplanes=planes=4, spatial=16x16 (basic block, width=planes).
    N, C, H, W = 2, 4, 16, 16
    inplanes = planes = width = C

    key = jax.random.PRNGKey(0)
    kx, kw1, kw2, kg1, kb1, km1, kv1, kg2, kb2, km2, kv2 = jax.random.split(key, 11)

    x_nchw = jax.random.normal(kx, (N, C, H, W), jnp.float32)

    # Conv weights (PyTorch OIHW layout), bias=False.
    w1_oihw = jax.random.normal(kw1, (width, inplanes, 3, 3), jnp.float32) * 0.1
    w2_oihw = jax.random.normal(kw2, (width, width, 3, 3), jnp.float32) * 0.1

    # BatchNorm2d params (inference mode), deterministic synthetic values.
    eps = 1e-5
    g1 = 1.0 + 0.1 * jax.random.normal(kg1, (width,), jnp.float32)
    be1 = 0.1 * jax.random.normal(kb1, (width,), jnp.float32)
    rm1 = 0.1 * jax.random.normal(km1, (width,), jnp.float32)
    rv1 = jnp.abs(jax.random.normal(kv1, (width,), jnp.float32)) + 0.5
    g2 = 1.0 + 0.1 * jax.random.normal(kg2, (width,), jnp.float32)
    be2 = 0.1 * jax.random.normal(kb2, (width,), jnp.float32)
    rm2 = 0.1 * jax.random.normal(km2, (width,), jnp.float32)
    rv2 = jnp.abs(jax.random.normal(kv2, (width,), jnp.float32)) + 0.5

    # Fold BN to per-channel scale/bias: y = x*scale + bias.
    s1 = g1 / jnp.sqrt(rv1 + eps)
    b1 = be1 - rm1 * s1
    s2 = g2 / jnp.sqrt(rv2 + eps)
    b2 = be2 - rm2 * s2

    # Re-layout for the kernel: NCHW -> NHWC, OIHW -> HWIO (glue).
    x_nhwc = jnp.transpose(x_nchw, (0, 2, 3, 1))
    w1_hwio = jnp.transpose(w1_oihw, (2, 3, 1, 0))
    w2_hwio = jnp.transpose(w2_oihw, (2, 3, 1, 0))

    # One-time weight prep (pure jnp), then a jitted forward.
    w1cat, w2t, bias = prepare_block_params(w1_hwio, w2_hwio, s1, b1, s2, b2, N, W)
    fwd = jax.jit(block_forward)

    out_nhwc = fwd(x_nhwc, w1cat, w2t, bias)
    out_nhwc = jax.block_until_ready(out_nhwc)
    out_nchw = jnp.transpose(out_nhwc, (0, 3, 1, 2))

    ref = ref_block(x_nchw, w1_oihw, w2_oihw, s1, b1, s2, b2)
    assert out_nchw.shape == ref.shape == (N, C, H, W)
    # MXU matmul accumulation vs the pure-f32 XLA reference -> relaxed tolerance.
    assert jnp.allclose(out_nchw, ref, atol=3e-2, rtol=3e-2), "mismatch vs reference"

    # TODO(synk): stride>1 / downsample / bottleneck variants not exercised (module defaults used).
    print("KERNEL_OK")
</pallas_src>

<mosaic_0001>
module attributes {stable_mosaic.version = 11 : i64} {
  func.func @block_kernel(%arg0: i32, %arg1: memref<24x384xf32, #tpu.memory_space<vmem>>, %arg2: memref<16x128xf32, #tpu.memory_space<vmem>>, %arg3: memref<384x128xf32, #tpu.memory_space<vmem>>, %arg4: memref<3x128x128xf32, #tpu.memory_space<vmem>>, %arg5: memref<2x128xf32, #tpu.memory_space<vmem>>, %arg6: memref<16x128xf32, #tpu.memory_space<vmem>>) attributes {dimension_semantics = [#tpu.dimension_semantics<arbitrary>], iteration_bounds = array<i64: 1>, scalar_prefetch = 0 : i64, scratch_operands = 0 : i64, tpu.core_type = #tpu.core_type<tc>, window_params = [{pipeline_mode = #tpu.pipeline_mode<synchronous>, transform_indices = @transform_0, window_bounds = array<i64: 24, 384>}, {pipeline_mode = #tpu.pipeline_mode<synchronous>, transform_indices = @transform_1, window_bounds = array<i64: 16, 128>}, {pipeline_mode = #tpu.pipeline_mode<synchronous>, transform_indices = @transform_2, window_bounds = array<i64: 384, 128>}, {pipeline_mode = #tpu.pipeline_mode<synchronous>, transform_indices = @transform_3, window_bounds = array<i64: 3, 128, 128>}, {pipeline_mode = #tpu.pipeline_mode<synchronous>, transform_indices = @transform_4, window_bounds = array<i64: 2, 128>}, {pipeline_mode = #tpu.pipeline_mode<synchronous>, transform_indices = @transform_5, window_bounds = array<i64: 16, 128>}]} {
    %c0 = arith.constant 0 : index
    %c0_0 = arith.constant 0 : index
    %0 = vector.load %arg5[%c0, %c0_0] : memref<2x128xf32, #tpu.memory_space<vmem>>, vector<1x128xf32>
    %c1 = arith.constant 1 : index
    %c0_1 = arith.constant 0 : index
    %1 = vector.load %arg5[%c1, %c0_1] : memref<2x128xf32, #tpu.memory_space<vmem>>, vector<1x128xf32>
    %c0_2 = arith.constant 0 : index
    %c0_3 = arith.constant 0 : index
    %2 = vector.load %arg1[%c0_2, %c0_3] : memref<24x384xf32, #tpu.memory_space<vmem>>, vector<24x384xf32>
    %c0_4 = arith.constant 0 : index
    %c0_5 = arith.constant 0 : index
    %3 = vector.load %arg3[%c0_4, %c0_5] : memref<384x128xf32, #tpu.memory_space<vmem>>, vector<384x128xf32>
    %cst = arith.constant dense<0.000000e+00> : vector<24x128xf32>
    %4 = tpu.matmul %2, %3, %cst {dimension_numbers = #tpu.dot_dimension_numbers<[1], [0], [0], [1], [0, 0, 1, 1], [], []>} : vector<24x384xf32>, vector<384x128xf32>, vector<24x128xf32> -> vector<24x128xf32>
    %5 = tpu.iota {dimensions = array<i32: 0>} : vector<24x1xi32>
    %c1_i32 = arith.constant 1 : i32
    %6 = vector.broadcast %c1_i32 : i32 to vector<24x1xi32>
    %7 = arith.cmpi sge, %5, %6 : vector<24x1xi32>
    %c16_i32 = arith.constant 16 : i32
    %8 = vector.broadcast %c16_i32 : i32 to vector<24x1xi32>
    %9 = arith.cmpi sle, %5, %8 : vector<24x1xi32>
    %10 = arith.andi %7, %9 : vector<24x1xi1>
    %11 = vector.broadcast %0 : vector<1x128xf32> to vector<24x128xf32>
    %12 = arith.addf %4, %11 : vector<24x128xf32>
    %cst_6 = arith.constant 0.000000e+00 : f32
    %13 = vector.broadcast %cst_6 : f32 to vector<24x128xf32>
    %14 = arith.maximumf %12, %13 : vector<24x128xf32>
    %cst_7 = arith.constant 0.000000e+00 : f32
    %15 = vector.shape_cast %10 : vector<24x1xi1> to vector<24x1xi1>
    %16 = vector.broadcast %15 : vector<24x1xi1> to vector<24x128xi1>
    %17 = vector.broadcast %cst_7 : f32 to vector<24x128xf32>
    %18 = arith.select %16, %14, %17 : vector<24x128xi1>, vector<24x128xf32>
    %c23_i32 = arith.constant 23 : i32
    %19 = tpu.dynamic_rotate %18 by %c23_i32 dim 0 : vector<24x128xf32>, i32 -> vector<24x128xf32>
    %c22_i32 = arith.constant 22 : i32
    %20 = tpu.dynamic_rotate %18 by %c22_i32 dim 0 : vector<24x128xf32>, i32 -> vector<24x128xf32>
    %21 = vector.extract_strided_slice %18 {offsets = [0, 0], sizes = [16, 128], strides = [1, 1]} : vector<24x128xf32> to vector<16x128xf32>
    %c0_8 = arith.constant 0 : index
    %c0_9 = arith.constant 0 : index
    %c0_10 = arith.constant 0 : index
    %22 = vector.load %arg4[%c0_8, %c0_9, %c0_10] : memref<3x128x128xf32, #tpu.memory_space<vmem>>, vector<1x128x128xf32>
    %23 = vector.shape_cast %22 : vector<1x128x128xf32> to vector<128x128xf32>
    %cst_11 = arith.constant dense<0.000000e+00> : vector<16x128xf32>
    %24 = tpu.matmul %21, %23, %cst_11 {dimension_numbers = #tpu.dot_dimension_numbers<[1], [0], [0], [1], [0, 0, 1, 1], [], []>} : vector<16x128xf32>, vector<128x128xf32>, vector<16x128xf32> -> vector<16x128xf32>
    %25 = vector.extract_strided_slice %19 {offsets = [0, 0], sizes = [16, 128], strides = [1, 1]} : vector<24x128xf32> to vector<16x128xf32>
    %c1_12 = arith.constant 1 : index
    %c0_13 = arith.constant 0 : index
    %c0_14 = arith.constant 0 : index
    %26 = vector.load %arg4[%c1_12, %c0_13, %c0_14] : memref<3x128x128xf32, #tpu.memory_space<vmem>>, vector<1x128x128xf32>
    %27 = vector.shape_cast %26 : vector<1x128x128xf32> to vector<128x128xf32>
    %cst_15 = arith.constant dense<0.000000e+00> : vector<16x128xf32>
    %28 = tpu.matmul %25, %27, %cst_15 {dimension_numbers = #tpu.dot_dimension_numbers<[1], [0], [0], [1], [0, 0, 1, 1], [], []>} : vector<16x128xf32>, vector<128x128xf32>, vector<16x128xf32> -> vector<16x128xf32>
    %29 = arith.addf %24, %28 : vector<16x128xf32>
    %30 = vector.extract_strided_slice %20 {offsets = [0, 0], sizes = [16, 128], strides = [1, 1]} : vector<24x128xf32> to vector<16x128xf32>
    %c2 = arith.constant 2 : index
    %c0_16 = arith.constant 0 : index
    %c0_17 = arith.constant 0 : index
    %31 = vector.load %arg4[%c2, %c0_16, %c0_17] : memref<3x128x128xf32, #tpu.memory_space<vmem>>, vector<1x128x128xf32>
    %32 = vector.shape_cast %31 : vector<1x128x128xf32> to vector<128x128xf32>
    %cst_18 = arith.constant dense<0.000000e+00> : vector<16x128xf32>
    %33 = tpu.matmul %30, %32, %cst_18 {dimension_numbers = #tpu.dot_dimension_numbers<[1], [0], [0], [1], [0, 0, 1, 1], [], []>} : vector<16x128xf32>, vector<128x128xf32>, vector<16x128xf32> -> vector<16x128xf32>
    %34 = arith.addf %29, %33 : vector<16x128xf32>
    %35 = vector.broadcast %1 : vector<1x128xf32> to vector<16x128xf32>
    %36 = arith.addf %34, %35 : vector<16x128xf32>
    %c0_19 = arith.constant 0 : index
    %c0_20 = arith.constant 0 : index
    %37 = vector.load %arg2[%c0_19, %c0_20] : memref<16x128xf32, #tpu.memory_space<vmem>>, vector<16x128xf32>
    %38 = arith.addf %36, %37 : vector<16x128xf32>
    %cst_21 = arith.constant 0.000000e+00 : f32
    %39 = vector.broadcast %cst_21 : f32 to vector<16x128xf32>
    %40 = arith.maximumf %38, %39 : vector<16x128xf32>
    %c0_22 = arith.constant 0 : index
    %c0_23 = arith.constant 0 : index
    %41 = vector.load %arg6[%c0_22, %c0_23] : memref<16x128xf32, #tpu.memory_space<vmem>>, vector<16x128xf32>
    tpu.vector_store %arg6[%c0_22, %c0_23], %40 {strides = array<i32>} : memref<16x128xf32, #tpu.memory_space<vmem>>, vector<16x128xf32>,
    return
  }
  func.func @transform_0(%arg0: i32) -> (i32, i32) {
    %c0_i32 = arith.constant 0 : i32
    %c0_i32_0 = arith.constant 0 : i32
    %c0_i32_1 = arith.constant 0 : i32
    return %c0_i32, %c0_i32_0 : i32, i32
  }
  func.func @transform_1(%arg0: i32) -> (i32, i32) {
    %c0_i32 = arith.constant 0 : i32
    %c0_i32_0 = arith.constant 0 : i32
    %c0_i32_1 = arith.constant 0 : i32
    return %c0_i32, %c0_i32_0 : i32, i32
  }
  func.func @transform_2(%arg0: i32) -> (i32, i32) {
    %c0_i32 = arith.constant 0 : i32
    %c0_i32_0 = arith.constant 0 : i32
    %c0_i32_1 = arith.constant 0 : i32
    return %c0_i32, %c0_i32_0 : i32, i32
  }
  func.func @transform_3(%arg0: i32) -> (i32, i32, i32) {
    %c0_i32 = arith.constant 0 : i32
    %c0_i32_0 = arith.constant 0 : i32
    %c0_i32_1 = arith.constant 0 : i32
    %c0_i32_2 = arith.constant 0 : i32
    return %c0_i32, %c0_i32_0, %c0_i32_1 : i32, i32, i32
  }
  func.func @transform_4(%arg0: i32) -> (i32, i32) {
    %c0_i32 = arith.constant 0 : i32
    %c0_i32_0 = arith.constant 0 : i32
    %c0_i32_1 = arith.constant 0 : i32
    return %c0_i32, %c0_i32_0 : i32, i32
  }
  func.func @transform_5(%arg0: i32) -> (i32, i32) {
    %c0_i32 = arith.constant 0 : i32
    %c0_i32_0 = arith.constant 0 : i32
    %c0_i32_1 = arith.constant 0 : i32
    return %c0_i32, %c0_i32_0 : i32, i32
  }
}

</mosaic_0001>

<llo_original>
// kernel: block_forward.1
$region0: #{block_forward.1}
  #allocation0 [shape = 'u32[]', space=smem, size = 0x4, offset = 0x4, fixed_abs, tag = 'smem constant byte address 0x4 - core index']
  #allocation1 [shape = 'u32[72,128]{1,0:T(1,128)}', space=vmem, size = 0x9000, scoped, tag = 'internal scratch']
  %s0 = inlined_call_operand.vmem [shape: f32[24,384], index: 0, kind: input, shape index: {}]
  %s1 = inlined_call_operand.vmem [shape: f32[16,128], index: 1, kind: input, shape index: {}]
  %s2 = inlined_call_operand.vmem [shape: f32[384,128], index: 2, kind: input, shape index: {}]
  %s3 = inlined_call_operand.hbm [shape: f32[3,128,128], index: 3, kind: input, shape index: {}]
  %s4 = inlined_call_operand.vmem [shape: f32[2,128], index: 4, kind: input, shape index: {}]
  %s5 = inlined_call_operand.vmem [shape: f32[16,128], index: 5, kind: output, shape index: {}]
  %s6 = sld [smem:[#allocation0]]
  $region34: #{block_forward.1} parent=0
    _
  %s8 = ssub.s32 1, %s6
  %s9 = scalar_select 0, %s8, %s6
  $region1: #{block_forward.1} parent=0
    #allocation2 [shape = 'u8[196608]{0}', space=vmem, size = 0x30000, scoped, tag = 'input window, operand 3, single buffered']
    #allocation3 [shape = 's32[1]{0}', space=sflag, size = 0x4, scoped, tag = 'scoped memory for block_forward.1']
    %10 = vsyncpa [#allocation3], 0
    // Predicated region
    $region2: #{block_forward.1} parent=1 // pred_check
      _
    $region3: #{block_forward.1} parent=1 // pred_check_branch
      %12 = sbr.rel (0) target = $region5
    $region4: #{block_forward.1} parent=1 // pred_region
      _
    $region5: #{block_forward.1} parent=1 // pred_fallthru
      _
    // Predicated region
    $region6: #{block_forward.1} parent=1 // pred_check
      _
    $region7: #{block_forward.1} parent=1 // pred_check_branch
      %14 = sbr.rel (0) target = $region9
    $region8: #{block_forward.1} parent=1 // pred_region
      _
    $region9: #{block_forward.1} parent=1 // pred_fallthru
      _
    // Predicated region
    $region10: #{block_forward.1} parent=1 // pred_check
      _
    $region11: #{block_forward.1} parent=1 // pred_check_branch
      %16 = sbr.rel (0) target = $region13
    $region12: #{block_forward.1} parent=1 // pred_region
      _
    $region13: #{block_forward.1} parent=1 // pred_fallthru
      _
    // Predicated region
    $region14: #{block_forward.1} parent=1 // pred_check
      _
    $region15: #{block_forward.1} parent=1 // pred_check_branch
      %18 = sbr.rel (0) target = $region17
    $region16: #{block_forward.1} parent=1 // pred_region
      %20 = vsyncadd [#allocation3], 0
      %s21 = sshll.u32 %s3, 4
      %s22 = int_to_ptr.hbm [resolvable:$true] %s21
      %s23 = sshll.u32 [#allocation2], 4
      %s24 = int_to_ptr.vmem [resolvable:$true] %s23
      %29 = dma.hbm_to_vmem [thread:$0]  %s22, 6144, %s24, [#allocation3], 128, 128, 8
    $region17: #{block_forward.1} parent=1 // pred_fallthru
      _
    // Predicated region
    $region18: #{block_forward.1} parent=1 // pred_check
      _
    $region19: #{block_forward.1} parent=1 // pred_check_branch
      %31 = sbr.rel (0) target = $region21
    $region20: #{block_forward.1} parent=1 // pred_region
      _
    $region21: #{block_forward.1} parent=1 // pred_fallthru
      _
    // Predicated region
    $region22: #{block_forward.1} parent=1 // pred_check
      _
    $region23: #{block_forward.1} parent=1 // pred_check_branch
      %33 = sbr.rel (0) target = $region25
    $region24: #{block_forward.1} parent=1 // pred_region
      %35 = dma.done [#allocation3], 6144
    $region25: #{block_forward.1} parent=1 // pred_fallthru
      _
    %v36 = vld [vmem:[%s4] sm:$0x1]
    %v37 = vld [vmem:[%s4 + $0x1] sm:$0x1]
    %v38 = vld [vmem:[%s0] sm:$0xff]
    %v39 = vld [vmem:[%s0 + $0x8] sm:$0xff]
    %v40 = vld [vmem:[%s0 + $0x10] sm:$0xff]
    %v41 = vld [vmem:[%s0 + $0x18] sm:$0xff]
    %v42 = vld [vmem:[%s0 + $0x20] sm:$0xff]
    %v43 = vld [vmem:[%s0 + $0x28] sm:$0xff]
    %v44 = vld [vmem:[%s0 + $0x30] sm:$0xff]
    %v45 = vld [vmem:[%s0 + $0x38] sm:$0xff]
    %v46 = vld [vmem:[%s0 + $0x40] sm:$0xff]
    %v47 = vld [vmem:[%s2] sm:$0xff]
    %v48 = vld [vmem:[%s2 + $0x8] sm:$0xff]
    %v49 = vld [vmem:[%s2 + $0x10] sm:$0xff]
    %v50 = vld [vmem:[%s2 + $0x18] sm:$0xff]
    %v51 = vld [vmem:[%s2 + $0x20] sm:$0xff]
    %v52 = vld [vmem:[%s2 + $0x28] sm:$0xff]
    %v53 = vld [vmem:[%s2 + $0x30] sm:$0xff]
    %v54 = vld [vmem:[%s2 + $0x38] sm:$0xff]
    %v55 = vld [vmem:[%s2 + $0x40] sm:$0xff]
    %v56 = vld [vmem:[%s2 + $0x48] sm:$0xff]
    %v57 = vld [vmem:[%s2 + $0x50] sm:$0xff]
    %v58 = vld [vmem:[%s2 + $0x58] sm:$0xff]
    %v59 = vld [vmem:[%s2 + $0x60] sm:$0xff]
    %v60 = vld [vmem:[%s2 + $0x68] sm:$0xff]
    %v61 = vld [vmem:[%s2 + $0x70] sm:$0xff]
    %v62 = vld [vmem:[%s2 + $0x78] sm:$0xff]
    %v63 = vld [vmem:[%s2 + $0x80] sm:$0xff]
    %v64 = vld [vmem:[%s2 + $0x88] sm:$0xff]
    %v65 = vld [vmem:[%s2 + $0x90] sm:$0xff]
    %v66 = vld [vmem:[%s2 + $0x98] sm:$0xff]
    %v67 = vld [vmem:[%s2 + $0xa0] sm:$0xff]
    %v68 = vld [vmem:[%s2 + $0xa8] sm:$0xff]
    %v69 = vld [vmem:[%s2 + $0xb0] sm:$0xff]
    %v70 = vld [vmem:[%s2 + $0xb8] sm:$0xff]
    %v71 = vld [vmem:[%s2 + $0xc0] sm:$0xff]
    %v72 = vld [vmem:[%s2 + $0xc8] sm:$0xff]
    %v73 = vld [vmem:[%s2 + $0xd0] sm:$0xff]
    %v74 = vld [vmem:[%s2 + $0xd8] sm:$0xff]
    %v75 = vld [vmem:[%s2 + $0xe0] sm:$0xff]
    %v76 = vld [vmem:[%s2 + $0xe8] sm:$0xff]
    %v77 = vld [vmem:[%s2 + $0xf0] sm:$0xff]
    %v78 = vld [vmem:[%s2 + $0xf8] sm:$0xff]
    %v79 = vld [vmem:[%s2 + $0x100] sm:$0xff]
    %v80 = vld [vmem:[%s2 + $0x108] sm:$0xff]
    %v81 = vld [vmem:[%s2 + $0x110] sm:$0xff]
    %v82 = vld [vmem:[%s2 + $0x118] sm:$0xff]
    %v83 = vld [vmem:[%s2 + $0x120] sm:$0xff]
    %v84 = vld [vmem:[%s2 + $0x128] sm:$0xff]
    %v85 = vld [vmem:[%s2 + $0x130] sm:$0xff]
    %v86 = vld [vmem:[%s2 + $0x138] sm:$0xff]
    %v87 = vld [vmem:[%s2 + $0x140] sm:$0xff]
    %v88 = vld [vmem:[%s2 + $0x148] sm:$0xff]
    %v89 = vld [vmem:[%s2 + $0x150] sm:$0xff]
    %v90 = vld [vmem:[%s2 + $0x158] sm:$0xff]
    %v91 = vld [vmem:[%s2 + $0x160] sm:$0xff]
    %v92 = vld [vmem:[%s2 + $0x168] sm:$0xff]
    %v93 = vld [vmem:[%s2 + $0x170] sm:$0xff]
    %v94 = vld [vmem:[%s2 + $0x178] sm:$0xff]
    %v95 = vlaneseq
    %v96 = vshrl.u32 %v95, 7
    %v97 = vadd.s32 %v96, 8
    %v98 = vadd.s32 %v96, 16
    %vm99 = vcmp.ge.s32.totalorder %v96, 1
    %vm100 = vcmp.ge.s32.totalorder %v97, 1
    %vm101 = vcmp.ge.s32.totalorder %v98, 1
    %vm102 = vcmp.le.s32.totalorder %v96, 16
    %vm103 = vcmp.le.s32.totalorder %v97, 16
    %vm104 = vcmp.le.s32.totalorder %v98, 16
    %vm105 = vmand %vm99, %vm102
    %vm106 = vmand %vm100, %vm103
    %vm107 = vmand %vm101, %vm104
    %v108 = vperm.slane %v36, 0
    %109 = vmatpush.msra.mxu0 %v62
    %110 = vmatpush.msra.mxu0 %v61
    %111 = vmatpush.msra.mxu0 %v60
    %112 = vmatpush.msra.mxu0 %v59
    %113 = vmatpush.msra.mxu0 %v58
    %114 = vmatpush.msra.mxu0 %v57
    %115 = vmatpush.msra.mxu0 %v56
    %116 = vmatpush.msra.mxu0 %v55
    %117 = vmatpush.msra.mxu0 %v54
    %118 = vmatpush.msra.mxu0 %v53
    %119 = vmatpush.msra.mxu0 %v52
    %120 = vmatpush.msra.mxu0 %v51
    %121 = vmatpush.msra.mxu0 %v50
    %122 = vmatpush.msra.mxu0 %v49
    %123 = vmatpush.msra.mxu0 %v48
    %124 = vmatpush.msra.mxu0 %v47
    %125 = vmatmul.f32.gmra.mxu0 %v38
    %v126 = vpop.f32.mrf.mxu0
    %v127 = vadd.f32 %v108, %v126
    %128 = vmatmul.f32.gmra.mxu0 %v41
    %v129 = vpop.f32.mrf.mxu0
    %v130 = vadd.f32 %v108, %v129
    %131 = vmatmul.f32.gmra.mxu0 %v44
    %v132 = vpop.f32.mrf.mxu0
    %v133 = vadd.f32 %v108, %v132
    %134 = vdwg.mxu0
    %135 = vmatpush.msra.mxu0 %v78
    %136 = vmatpush.msra.mxu0 %v77
    %137 = vmatpush.msra.mxu0 %v76
    %138 = vmatpush.msra.mxu0 %v75
    %139 = vmatpush.msra.mxu0 %v74
    %140 = vmatpush.msra.mxu0 %v73
    %141 = vmatpush.msra.mxu0 %v72
    %142 = vmatpush.msra.mxu0 %v71
    %143 = vmatpush.msra.mxu0 %v70
    %144 = vmatpush.msra.mxu0 %v69
    %145 = vmatpush.msra.mxu0 %v68
    %146 = vmatpush.msra.mxu0 %v67
    %147 = vmatpush.msra.mxu0 %v66
    %148 = vmatpush.msra.mxu0 %v65
    %149 = vmatpush.msra.mxu0 %v64
    %150 = vmatpush.msra.mxu0 %v63
    %151 = vmatmul.f32.gmra.mxu0 %v39
    %v152 = vpop.f32.mrf.mxu0
    %v153 = vadd.f32 %v127, %v152
    %154 = vmatmul.f32.gmra.mxu0 %v42
    %v155 = vpop.f32.mrf.mxu0
    %v156 = vadd.f32 %v130, %v155
    %157 = vmatmul.f32.gmra.mxu0 %v45
    %v158 = vpop.f32.mrf.mxu0
    %v159 = vadd.f32 %v133, %v158
    %160 = vdwg.mxu0
    %161 = vmatpush.msra.mxu0 %v94
    %162 = vmatpush.msra.mxu0 %v93
    %163 = vmatpush.msra.mxu0 %v92
    %164 = vmatpush.msra.mxu0 %v91
    %165 = vmatpush.msra.mxu0 %v90
    %166 = vmatpush.msra.mxu0 %v89
    %167 = vmatpush.msra.mxu0 %v88
    %168 = vmatpush.msra.mxu0 %v87
    %169 = vmatpush.msra.mxu0 %v86
    %170 = vmatpush.msra.mxu0 %v85
    %171 = vmatpush.msra.mxu0 %v84
    %172 = vmatpush.msra.mxu0 %v83
    %173 = vmatpush.msra.mxu0 %v82
    %174 = vmatpush.msra.mxu0 %v81
    %175 = vmatpush.msra.mxu0 %v80
    %176 = vmatpush.msra.mxu0 %v79
    %177 = vmatmul.f32.gmra.mxu0 %v40
    %v178 = vpop.f32.mrf.mxu0
    %v179 = vadd.f32 %v153, %v178
    %180 = vmatmul.f32.gmra.mxu0 %v43
    %v181 = vpop.f32.mrf.mxu0
    %v182 = vadd.f32 %v156, %v181
    %183 = vmatmul.f32.gmra.mxu0 %v46
    %v184 = vpop.f32.mrf.mxu0
    %v185 = vadd.f32 %v159, %v184
    %186 = vdwg.mxu0
    %v187 = vmax.f32 %v179, 0.0
    %v188 = vmax.f32 %v182, 0.0
    %v189 = vmax.f32 %v185, 0.0
    %v190 = vsel %vm105, 1, 0
    %v191 = vsel %vm106, 1, 0
    %v192 = vsel %vm107, 1, 0
    %vm193 = vcmp.eq.s32.totalorder %v190, 1
    %vm194 = vcmp.eq.s32.totalorder %v191, 1
    %vm195 = vcmp.eq.s32.totalorder %v192, 1
    %v196 = vsel %vm193, %v187, 0.0
    %v197 = vsel %vm194, %v188, 0.0
    %v198 = vsel %vm195, %v189, 0.0
    %v199 = vrot.slane %v196, 1
    %v200 = vrot.slane %v197, 1
    %v201 = vrot.slane %v198, 1
    %vm202 = vcmp.lt.s32.totalorder %v96, 7
    %v203 = vsel %vm202, %v200, %v201
    %v204 = vsel %vm202, %v199, %v200
    %v205 = vrot.slane %v196, 2
    %v206 = vrot.slane %v197, 2
    %v207 = vrot.slane %v198, 2
    %vm208 = vcmp.lt.s32.totalorder %v96, 6
    %v209 = vsel %vm208, %v206, %v207
    %v210 = vsel %vm208, %v205, %v206
    %v211 = vld [vmem:[#allocation2] sm:$0xff]
    %v212 = vld [vmem:[#allocation2 + $0x8] sm:$0xff]
    %v213 = vld [vmem:[#allocation2 + $0x10] sm:$0xff]
    %v214 = vld [vmem:[#allocation2 + $0x18] sm:$0xff]
    %v215 = vld [vmem:[#allocation2 + $0x20] sm:$0xff]
    %v216 = vld [vmem:[#allocation2 + $0x28] sm:$0xff]
    %v217 = vld [vmem:[#allocation2 + $0x30] sm:$0xff]
    %v218 = vld [vmem:[#allocation2 + $0x38] sm:$0xff]
    %v219 = vld [vmem:[#allocation2 + $0x40] sm:$0xff]
    %v220 = vld [vmem:[#allocation2 + $0x48] sm:$0xff]
    %v221 = vld [vmem:[#allocation2 + $0x50] sm:$0xff]
    %v222 = vld [vmem:[#allocation2 + $0x58] sm:$0xff]
    %v223 = vld [vmem:[#allocation2 + $0x60] sm:$0xff]
    %v224 = vld [vmem:[#allocation2 + $0x68] sm:$0xff]
    %v225 = vld [vmem:[#allocation2 + $0x70] sm:$0xff]
    %v226 = vld [vmem:[#allocation2 + $0x78] sm:$0xff]
    %s227 = scalar_lea.vmem [#allocation2], 128
    %v228 = vld [vmem:[%s227] sm:$0xff]
    %v229 = vld [vmem:[%s227 + $0x8] sm:$0xff]
    %v230 = vld [vmem:[%s227 + $0x10] sm:$0xff]
    %v231 = vld [vmem:[%s227 + $0x18] sm:$0xff]
    %v232 = vld [vmem:[%s227 + $0x20] sm:$0xff]
    %v233 = vld [vmem:[%s227 + $0x28] sm:$0xff]
    %v234 = vld [vmem:[%s227 + $0x30] sm:$0xff]
    %v235 = vld [vmem:[%s227 + $0x38] sm:$0xff]
    %v236 = vld [vmem:[%s227 + $0x40] sm:$0xff]
    %v237 = vld [vmem:[%s227 + $0x48] sm:$0xff]
    %v238 = vld [vmem:[%s227 + $0x50] sm:$0xff]
    %v239 = vld [vmem:[%s227 + $0x58] sm:$0xff]
    %v240 = vld [vmem:[%s227 + $0x60] sm:$0xff]
    %v241 = vld [vmem:[%s227 + $0x68] sm:$0xff]
    %v242 = vld [vmem:[%s227 + $0x70] sm:$0xff]
    %v243 = vld [vmem:[%s227 + $0x78] sm:$0xff]
    %244 = vmatpush.msra.mxu0 %v243
    %245 = vmatpush.msra.mxu0 %v242
    %246 = vmatpush.msra.mxu0 %v241
    %247 = vmatpush.msra.mxu0 %v240
    %248 = vmatpush.msra.mxu0 %v239
    %249 = vmatpush.msra.mxu0 %v238
    %250 = vmatpush.msra.mxu0 %v237
    %251 = vmatpush.msra.mxu0 %v236
    %252 = vmatpush.msra.mxu0 %v235
    %253 = vmatpush.msra.mxu0 %v234
    %254 = vmatpush.msra.mxu0 %v233
    %255 = vmatpush.msra.mxu0 %v232
    %256 = vmatpush.msra.mxu0 %v231
    %257 = vmatpush.msra.mxu0 %v230
    %258 = vmatpush.msra.mxu0 %v229
    %259 = vmatpush.msra.mxu0 %v228
    %260 = vmatmul.f32.gmra.mxu0 %v204
    %v261 = vpop.f32.mrf.mxu0
    %v262 = vadd.f32 0.0, %v261
    %263 = vmatmul.f32.gmra.mxu0 %v203
    %v264 = vpop.f32.mrf.mxu0
    %v265 = vadd.f32 0.0, %v264
    %266 = vdwg.mxu0
    %267 = vmatpush.msra.mxu0 %v226
    %268 = vmatpush.msra.mxu0 %v225
    %269 = vmatpush.msra.mxu0 %v224
    %270 = vmatpush.msra.mxu0 %v223
    %271 = vmatpush.msra.mxu0 %v222
    %272 = vmatpush.msra.mxu0 %v221
    %273 = vmatpush.msra.mxu0 %v220
    %274 = vmatpush.msra.mxu0 %v219
    %275 = vmatpush.msra.mxu0 %v218
    %276 = vmatpush.msra.mxu0 %v217
    %277 = vmatpush.msra.mxu0 %v216
    %278 = vmatpush.msra.mxu0 %v215
    %279 = vmatpush.msra.mxu0 %v214
    %280 = vmatpush.msra.mxu0 %v213
    %281 = vmatpush.msra.mxu0 %v212
    %282 = vmatpush.msra.mxu0 %v211
    %283 = vmatmul.f32.gmra.mxu0 %v196
    %v284 = vpop.f32.mrf.mxu0
    %v285 = vadd.f32 %v262, %v284
    %286 = vmatmul.f32.gmra.mxu0 %v197
    %v287 = vpop.f32.mrf.mxu0
    %v288 = vadd.f32 %v265, %v287
    %289 = vdwg.mxu0
    %s290 = scalar_lea.vmem [#allocation2], 256
    %v291 = vld [vmem:[%s290] sm:$0xff]
    %v292 = vld [vmem:[%s290 + $0x8] sm:$0xff]
    %v293 = vld [vmem:[%s290 + $0x10] sm:$0xff]
    %v294 = vld [vmem:[%s290 + $0x18] sm:$0xff]
    %v295 = vld [vmem:[%s290 + $0x20] sm:$0xff]
    %v296 = vld [vmem:[%s290 + $0x28] sm:$0xff]
    %v297 = vld [vmem:[%s290 + $0x30] sm:$0xff]
    %v298 = vld [vmem:[%s290 + $0x38] sm:$0xff]
    %v299 = vld [vmem:[%s290 + $0x40] sm:$0xff]
    %v300 = vld [vmem:[%s290 + $0x48] sm:$0xff]
    %v301 = vld [vmem:[%s290 + $0x50] sm:$0xff]
    %v302 = vld [vmem:[%s290 + $0x58] sm:$0xff]
    %v303 = vld [vmem:[%s290 + $0x60] sm:$0xff]
    %v304 = vld [vmem:[%s290 + $0x68] sm:$0xff]
    %v305 = vld [vmem:[%s290 + $0x70] sm:$0xff]
    %v306 = vld [vmem:[%s290 + $0x78] sm:$0xff]
    %307 = vmatpush.msra.mxu0 %v306
    %308 = vmatpush.msra.mxu0 %v305
    %309 = vmatpush.msra.mxu0 %v304
    %310 = vmatpush.msra.mxu0 %v303
    %311 = vmatpush.msra.mxu0 %v302
    %312 = vmatpush.msra.mxu0 %v301
    %313 = vmatpush.msra.mxu0 %v300
    %314 = vmatpush.msra.mxu0 %v299
    %315 = vmatpush.msra.mxu0 %v298
    %316 = vmatpush.msra.mxu0 %v297
    %317 = vmatpush.msra.mxu0 %v296
    %318 = vmatpush.msra.mxu0 %v295
    %319 = vmatpush.msra.mxu0 %v294
    %320 = vmatpush.msra.mxu0 %v293
    %321 = vmatpush.msra.mxu0 %v292
    %322 = vmatpush.msra.mxu0 %v291
    %323 = vmatmul.f32.gmra.mxu0 %v210
    %v324 = vpop.f32.mrf.mxu0
    %v325 = vadd.f32 0.0, %v324
    %326 = vmatmul.f32.gmra.mxu0 %v209
    %v327 = vpop.f32.mrf.mxu0
    %v328 = vadd.f32 0.0, %v327
    %329 = vdwg.mxu0
    %v330 = vadd.f32 %v285, %v325
    %v331 = vadd.f32 %v288, %v328
    %v332 = vperm.slane %v37, 0
    %v333 = vadd.f32 %v330, %v332
    %v334 = vadd.f32 %v331, %v332
    %v335 = vld [vmem:[%s1] sm:$0xff]
    %v336 = vld [vmem:[%s1 + $0x8] sm:$0xff]
    %v337 = vadd.f32 %v333, %v335
    %v338 = vadd.f32 %v334, %v336
    %v339 = vmax.f32 %v337, 0.0
    %v340 = vmax.f32 %v338, 0.0
    %341 = vst [vmem:[%s5] sm:$0xff] %v339
    %342 = vst [vmem:[%s5 + $0x8] sm:$0xff] %v340
    // Predicated region
    $region26: #{block_forward.1} parent=1 // pred_check
      _
    $region27: #{block_forward.1} parent=1 // pred_check_branch
      %344 = sbr.rel (0) target = $region29
    $region28: #{block_forward.1} parent=1 // pred_region
      _
    $region29: #{block_forward.1} parent=1 // pred_fallthru
      _
    // Predicated region
    $region30: #{block_forward.1} parent=1 // pred_check
      _
    $region31: #{block_forward.1} parent=1 // pred_check_branch
      %346 = sbr.rel (0) target = $region33
    $region32: #{block_forward.1} parent=1 // pred_region
      _
    $region33: #{block_forward.1} parent=1 // pred_fallthru
      _
    %347 = vsyncpa [#allocation3], 1

</llo_original>
